<compile_context>
chip_gen: v5e
topology: v5e:2x2
jax: 0.10.0
libtpu: 0.0.40
codegen_flags: <defaults>
</compile_context>

<pallas_src>
import functools

import jax
import jax.numpy as jnp
from jax.experimental import pallas as pl
from jax.experimental.pallas import tpu as pltpu


def _round_up(n, m):
    return ((n + m - 1) // m) * m


def _sigmoid(t):
    # Clamp so exp(-t) stays finite (t < ~-88 would give inf -> vrcp(inf)=0
    # -> inf*0=NaN in the NR refinement).  sigmoid(-30) ~ 1e-13, well below
    # f32 noise for this model.
    t = jnp.maximum(t, -30.0)
    # exp -> EUP; approximate reciprocal -> EUP (vrcp).  One Newton-Raphson
    # step restores ~f32 accuracy far cheaper than an exact f32 divide.
    d = 1.0 + jnp.exp(-t)
    r = pl.reciprocal(d, approx=True)
    return r * (2.0 - d * r)


def cvae_kernel(
    # per-block inputs (f32)
    x_ref, cond_ref, eps_ref,
    # encoder (weights bf16, biases f32)
    we1_ref, be1_ref, we2_ref, be2_ref,
    # fused heads: wh = [wmu | wlv] (bf16), bh = [bmu | blv] (f32)
    wh_ref, bh_ref,
    # decoder (layer 1 split into z-part / cond-part), weights bf16, biases f32
    wd1z_ref, wd1c_ref, bd1_ref,
    wd2_ref, bd2_ref, wd3_ref, bd3_ref,
    # packed output: [recon | mu | logvar] (f32)
    out_ref,
    *, input_dim, latent_dim,
):
    f32 = jnp.float32
    bf16 = jnp.bfloat16

    def mm(a, w_ref):
        # bf16 operands on the MXU, f32 accumulation.
        return jnp.dot(a.astype(bf16), w_ref[...], preferred_element_type=f32)

    x = x_ref[...]

    # ---- encoder: Linear + Sigmoid, Linear + Sigmoid ----
    h = _sigmoid(mm(x, we1_ref) + be1_ref[...])
    h = _sigmoid(mm(h, we2_ref) + be2_ref[...])

    # ---- fused mu/logvar head: one MXU pass, one bias add ----
    head = mm(h, wh_ref) + bh_ref[...]
    mu = head[:, :latent_dim]
    logvar = head[:, latent_dim:]

    # ---- reparameterize: z = mu + eps * exp(0.5 * logvar) (all f32) ----
    z = mu + eps_ref[...] * jnp.exp(0.5 * logvar)

    # ---- decoder ----
    # torch.cat((z, condition), dim=1) @ Wd1 computed as a split matmul
    # (z @ Wd1[:L] + cond @ Wd1[L:]) to avoid an in-kernel concat on the
    # contraction axis.
    d = _sigmoid(mm(z, wd1z_ref) + mm(cond_ref[...], wd1c_ref) + bd1_ref[...])
    d = _sigmoid(mm(d, wd2_ref) + bd2_ref[...])
    recon = mm(d, wd3_ref) + bd3_ref[...]

    # ---- single packed write: [recon | mu | logvar] in one store ----
    out_ref[...] = jnp.concatenate([recon, head], axis=1)


def make_cvae_params(key, input_dim, latent_dim, condition_dim, hidden_layers):
    """Deterministic synthetic parameters. Weights stored as (in, out), f32."""
    dims = {}
    ks = jax.random.split(key, 16)
    i = iter(range(16))

    def w(k, shape):
        return (jax.random.normal(k, shape, jnp.float32) * 0.05).astype(jnp.float32)

    def b(k, n):
        return (jax.random.normal(k, (1, n), jnp.float32) * 0.05).astype(jnp.float32)

    h0, h1 = hidden_layers
    dims["we1"] = w(ks[next(i)], (input_dim, h0))
    dims["be1"] = b(ks[next(i)], h0)
    dims["we2"] = w(ks[next(i)], (h0, h1))
    dims["be2"] = b(ks[next(i)], h1)
    dims["wmu"] = w(ks[next(i)], (h1, latent_dim))
    dims["bmu"] = b(ks[next(i)], latent_dim)
    dims["wlv"] = w(ks[next(i)], (h1, latent_dim))
    dims["blv"] = b(ks[next(i)], latent_dim)
    wd1 = w(ks[next(i)], (latent_dim + condition_dim, h1))
    dims["wd1z"] = wd1[:latent_dim]
    dims["wd1c"] = wd1[latent_dim:]
    dims["bd1"] = b(ks[next(i)], h1)
    dims["wd2"] = w(ks[next(i)], (h1, h0))
    dims["bd2"] = b(ks[next(i)], h0)
    dims["wd3"] = w(ks[next(i)], (h0, input_dim))
    dims["bd3"] = b(ks[next(i)], input_dim)
    return dims


@functools.partial(jax.jit, static_argnames=("block_b",))
def cvae_forward(x, condition, eps, params, *, block_b=1024):
    B, input_dim = x.shape
    latent_dim = eps.shape[1]
    cond_dim = condition.shape[1]
    h0 = params["we1"].shape[1]
    h1 = params["we2"].shape[1]

    bf16 = jnp.bfloat16

    # Fuse the mu/logvar heads in the wrapper; cast all matmul weights to bf16
    # once here so the VMEM-resident copies are already bf16.
    wh = jnp.concatenate([params["wmu"], params["wlv"]], axis=1).astype(bf16)  # (h1, 2L)
    bh = jnp.concatenate([params["bmu"], params["blv"]], axis=1)               # (1, 2L) f32

    we1 = params["we1"].astype(bf16)
    we2 = params["we2"].astype(bf16)
    wd1z = params["wd1z"].astype(bf16)
    wd1c = params["wd1c"].astype(bf16)
    wd2 = params["wd2"].astype(bf16)
    wd3 = params["wd3"].astype(bf16)

    # Batch tiling: pad B to a multiple of the block size (>=8 for sublane
    # alignment), grid over batch, slice padded rows off afterwards.
    b_al = _round_up(B, 8)
    blk = min(block_b, max(8, b_al))
    # v7x has 2 TensorCores: when the batch allows, keep >= 2 grid steps so
    # dimension_semantics=("parallel",) can shard across both cores.
    if b_al >= 16 and blk >= b_al:
        blk = _round_up(b_al // 2, 8)
    b_pad = _round_up(B, blk)
    if b_pad != B:
        pad = ((0, b_pad - B), (0, 0))
        x = jnp.pad(x, pad)
        condition = jnp.pad(condition, pad)
        eps = jnp.pad(eps, pad)

    out_dim = input_dim + 2 * latent_dim

    args = (
        x, condition, eps,
        we1, params["be1"], we2, params["be2"],
        wh, bh,
        wd1z, wd1c, params["bd1"],
        wd2, params["bd2"], wd3, params["bd3"],
    )

    def row_spec(n):
        return pl.BlockSpec((blk, n), lambda i: (i, 0))

    def fixed_spec(a):
        # Full-array block, same block index every step -> stays VMEM-resident.
        return pl.BlockSpec(a.shape, lambda i: (0, 0))

    in_specs = (
        [row_spec(input_dim), row_spec(cond_dim), row_spec(latent_dim)]
        + [fixed_spec(a) for a in args[3:]]
    )
    out_spec = pl.BlockSpec((blk, out_dim), lambda i: (i, 0))

    flops = 2 * b_pad * (
        input_dim * h0 + h0 * h1 + h1 * 2 * latent_dim
        + latent_dim * h1 + cond_dim * h1 + h1 * h0 + h0 * input_dim
    )
    transcendentals = b_pad * (4 * (h0 + h1) + latent_dim)
    bytes_accessed = (
        sum(int(a.size) * a.dtype.itemsize for a in args)
        + 4 * b_pad * out_dim
    )

    kernel = functools.partial(cvae_kernel, input_dim=input_dim, latent_dim=latent_dim)

    out = pl.pallas_call(
        kernel,
        out_shape=jax.ShapeDtypeStruct((b_pad, out_dim), jnp.float32),
        grid=(b_pad // blk,),
        in_specs=in_specs,
        out_specs=out_spec,
        compiler_params=pltpu.CompilerParams(
            dimension_semantics=("parallel",),
            vmem_limit_bytes=32 * 1024 * 1024,
        ),
        cost_estimate=pl.CostEstimate(
            flops=flops,
            transcendentals=transcendentals,
            bytes_accessed=bytes_accessed,
        ),
    )(*args)

    recon = out[:B, :input_dim]
    mu = out[:B, input_dim:input_dim + latent_dim]
    logvar = out[:B, input_dim + latent_dim:]
    return recon, mu, logvar


def cvae_reference(x, condition, eps, params):
    """Pure-JAX f32 reference mirroring the PyTorch forward."""
    sig = lambda t: 1.0 / (1.0 + jnp.exp(-t))
    h = sig(x @ params["we1"] + params["be1"])
    h = sig(h @ params["we2"] + params["be2"])
    mu = h @ params["wmu"] + params["bmu"]
    logvar = h @ params["wlv"] + params["blv"]
    z = mu + eps * jnp.exp(0.5 * logvar)
    combined = jnp.concatenate([z, condition], axis=1)
    wd1 = jnp.concatenate([params["wd1z"], params["wd1c"]], axis=0)
    d = sig(combined @ wd1 + params["bd1"])
    d = sig(d @ params["wd2"] + params["bd2"])
    recon = d @ params["wd3"] + params["bd3"]
    return recon, mu, logvar


if __name__ == "__main__":
    # Small shapes consistent with the module's forward.
    batch = 8
    input_dim = 16
    latent_dim = 8
    condition_dim = 4
    hidden_layers = [64 * (2 ** i) for i in range(2)]  # [64, 128]

    key = jax.random.PRNGKey(0)
    kx, kc, keps, kp = jax.random.split(key, 4)
    x = jax.random.normal(kx, (batch, input_dim), jnp.float32)
    condition = jax.random.normal(kc, (batch, condition_dim), jnp.float32)
    # eps corresponds to torch.randn_like(std) in reparameterize (supplied
    # externally so the kernel is deterministic).
    eps = jax.random.normal(keps, (batch, latent_dim), jnp.float32)

    params = make_cvae_params(kp, input_dim, latent_dim, condition_dim, hidden_layers)

    recon_x, mu, logvar = cvae_forward(x, condition, eps, params)
    jax.block_until_ready((recon_x, mu, logvar))

    r_ref, mu_ref, lv_ref = cvae_reference(x, condition, eps, params)
    # Tolerance covers bf16 matmul operands + the EUP approx-reciprocal sigmoid.
    assert jnp.allclose(recon_x, r_ref, atol=1e-2, rtol=1e-2), "recon mismatch"
    assert jnp.allclose(mu, mu_ref, atol=1e-2, rtol=1e-2), "mu mismatch"
    assert jnp.allclose(logvar, lv_ref, atol=1e-2, rtol=1e-2), "logvar mismatch"

    print("KERNEL_OK")
</pallas_src>

<mosaic_0001>
module attributes {stable_mosaic.version = 11 : i64} {
  func.func @cvae_kernel(%arg0: i32, %arg1: memref<8x16xf32, #tpu.memory_space<vmem>>, %arg2: memref<8x4xf32, #tpu.memory_space<vmem>>, %arg3: memref<8x8xf32, #tpu.memory_space<vmem>>, %arg4: memref<16x64xbf16, #tpu.memory_space<vmem>>, %arg5: memref<1x64xf32, #tpu.memory_space<vmem>>, %arg6: memref<64x128xbf16, #tpu.memory_space<vmem>>, %arg7: memref<1x128xf32, #tpu.memory_space<vmem>>, %arg8: memref<128x16xbf16, #tpu.memory_space<vmem>>, %arg9: memref<1x16xf32, #tpu.memory_space<vmem>>, %arg10: memref<8x128xbf16, #tpu.memory_space<vmem>>, %arg11: memref<4x128xbf16, #tpu.memory_space<vmem>>, %arg12: memref<1x128xf32, #tpu.memory_space<vmem>>, %arg13: memref<128x64xbf16, #tpu.memory_space<vmem>>, %arg14: memref<1x64xf32, #tpu.memory_space<vmem>>, %arg15: memref<64x16xbf16, #tpu.memory_space<vmem>>, %arg16: memref<1x16xf32, #tpu.memory_space<vmem>>, %arg17: memref<8x32xf32, #tpu.memory_space<vmem>>) attributes {dimension_semantics = [#tpu.dimension_semantics<parallel>], iteration_bounds = array<i64: 1>, scalar_prefetch = 0 : i64, scratch_operands = 0 : i64, tpu.core_type = #tpu.core_type<tc>, window_params = [{transform_indices = @transform_0, window_bounds = array<i64: 8, 16>}, {transform_indices = @transform_1, window_bounds = array<i64: 8, 4>}, {transform_indices = @transform_2, window_bounds = array<i64: 8, 8>}, {pipeline_mode = #tpu.pipeline_mode<synchronous>, transform_indices = @transform_3, window_bounds = array<i64: 16, 64>}, {pipeline_mode = #tpu.pipeline_mode<synchronous>, transform_indices = @transform_4, window_bounds = array<i64: 1, 64>}, {pipeline_mode = #tpu.pipeline_mode<synchronous>, transform_indices = @transform_5, window_bounds = array<i64: 64, 128>}, {pipeline_mode = #tpu.pipeline_mode<synchronous>, transform_indices = @transform_6, window_bounds = array<i64: 1, 128>}, {pipeline_mode = #tpu.pipeline_mode<synchronous>, transform_indices = @transform_7, window_bounds = array<i64: 128, 16>}, {pipeline_mode = #tpu.pipeline_mode<synchronous>, transform_indices = @transform_8, window_bounds = array<i64: 1, 16>}, {pipeline_mode = #tpu.pipeline_mode<synchronous>, transform_indices = @transform_9, window_bounds = array<i64: 8, 128>}, {pipeline_mode = #tpu.pipeline_mode<synchronous>, transform_indices = @transform_10, window_bounds = array<i64: 4, 128>}, {pipeline_mode = #tpu.pipeline_mode<synchronous>, transform_indices = @transform_11, window_bounds = array<i64: 1, 128>}, {pipeline_mode = #tpu.pipeline_mode<synchronous>, transform_indices = @transform_12, window_bounds = array<i64: 128, 64>}, {pipeline_mode = #tpu.pipeline_mode<synchronous>, transform_indices = @transform_13, window_bounds = array<i64: 1, 64>}, {pipeline_mode = #tpu.pipeline_mode<synchronous>, transform_indices = @transform_14, window_bounds = array<i64: 64, 16>}, {pipeline_mode = #tpu.pipeline_mode<synchronous>, transform_indices = @transform_15, window_bounds = array<i64: 1, 16>}, {transform_indices = @transform_16, window_bounds = array<i64: 8, 32>}]} {
    %c0 = arith.constant 0 : index
    %c0_0 = arith.constant 0 : index
    %0 = vector.load %arg1[%c0, %c0_0] : memref<8x16xf32, #tpu.memory_space<vmem>>, vector<8x16xf32>
    %1 = arith.truncf %0 : vector<8x16xf32> to vector<8x16xbf16>
    %c0_1 = arith.constant 0 : index
    %c0_2 = arith.constant 0 : index
    %2 = vector.load %arg4[%c0_1, %c0_2] : memref<16x64xbf16, #tpu.memory_space<vmem>>, vector<16x64xbf16>
    %cst = arith.constant dense<0.000000e+00> : vector<8x64xf32>
    %3 = tpu.matmul %1, %2, %cst {dimension_numbers = #tpu.dot_dimension_numbers<[1], [0], [0], [1], [0, 0, 1, 1], [], []>} : vector<8x16xbf16>, vector<16x64xbf16>, vector<8x64xf32> -> vector<8x64xf32>
    %c0_3 = arith.constant 0 : index
    %c0_4 = arith.constant 0 : index
    %4 = vector.load %arg5[%c0_3, %c0_4] : memref<1x64xf32, #tpu.memory_space<vmem>>, vector<1x64xf32>
    %5 = vector.broadcast %4 : vector<1x64xf32> to vector<8x64xf32>
    %6 = arith.addf %3, %5 : vector<8x64xf32>
    %cst_5 = arith.constant -3.000000e+01 : f32
    %7 = vector.broadcast %cst_5 : f32 to vector<8x64xf32>
    %8 = arith.maximumf %6, %7 : vector<8x64xf32>
    %cst_6 = arith.constant 0.000000e+00 : f32
    %9 = vector.broadcast %cst_6 : f32 to vector<8x64xf32>
    %10 = arith.subf %9, %8 : vector<8x64xf32>
    %11 = math.exp %10 : vector<8x64xf32>
    %cst_7 = arith.constant 1.000000e+00 : f32
    %12 = vector.broadcast %cst_7 : f32 to vector<8x64xf32>
    %13 = arith.addf %12, %11 : vector<8x64xf32>
    %14 = tpu.reciprocal %13 {approx = true} : vector<8x64xf32> -> vector<8x64xf32>
    %15 = arith.mulf %13, %14 : vector<8x64xf32>
    %cst_8 = arith.constant 2.000000e+00 : f32
    %16 = vector.broadcast %cst_8 : f32 to vector<8x64xf32>
    %17 = arith.subf %16, %15 : vector<8x64xf32>
    %18 = arith.mulf %14, %17 : vector<8x64xf32>
    %19 = arith.truncf %18 : vector<8x64xf32> to vector<8x64xbf16>
    %c0_9 = arith.constant 0 : index
    %c0_10 = arith.constant 0 : index
    %20 = vector.load %arg6[%c0_9, %c0_10] : memref<64x128xbf16, #tpu.memory_space<vmem>>, vector<64x128xbf16>
    %cst_11 = arith.constant dense<0.000000e+00> : vector<8x128xf32>
    %21 = tpu.matmul %19, %20, %cst_11 {dimension_numbers = #tpu.dot_dimension_numbers<[1], [0], [0], [1], [0, 0, 1, 1], [], []>} : vector<8x64xbf16>, vector<64x128xbf16>, vector<8x128xf32> -> vector<8x128xf32>
    %c0_12 = arith.constant 0 : index
    %c0_13 = arith.constant 0 : index
    %22 = vector.load %arg7[%c0_12, %c0_13] : memref<1x128xf32, #tpu.memory_space<vmem>>, vector<1x128xf32>
    %23 = vector.broadcast %22 : vector<1x128xf32> to vector<8x128xf32>
    %24 = arith.addf %21, %23 : vector<8x128xf32>
    %cst_14 = arith.constant -3.000000e+01 : f32
    %25 = vector.broadcast %cst_14 : f32 to vector<8x128xf32>
    %26 = arith.maximumf %24, %25 : vector<8x128xf32>
    %cst_15 = arith.constant 0.000000e+00 : f32
    %27 = vector.broadcast %cst_15 : f32 to vector<8x128xf32>
    %28 = arith.subf %27, %26 : vector<8x128xf32>
    %29 = math.exp %28 : vector<8x128xf32>
    %cst_16 = arith.constant 1.000000e+00 : f32
    %30 = vector.broadcast %cst_16 : f32 to vector<8x128xf32>
    %31 = arith.addf %30, %29 : vector<8x128xf32>
    %32 = tpu.reciprocal %31 {approx = true} : vector<8x128xf32> -> vector<8x128xf32>
    %33 = arith.mulf %31, %32 : vector<8x128xf32>
    %cst_17 = arith.constant 2.000000e+00 : f32
    %34 = vector.broadcast %cst_17 : f32 to vector<8x128xf32>
    %35 = arith.subf %34, %33 : vector<8x128xf32>
    %36 = arith.mulf %32, %35 : vector<8x128xf32>
    %37 = arith.truncf %36 : vector<8x128xf32> to vector<8x128xbf16>
    %c0_18 = arith.constant 0 : index
    %c0_19 = arith.constant 0 : index
    %38 = vector.load %arg8[%c0_18, %c0_19] : memref<128x16xbf16, #tpu.memory_space<vmem>>, vector<128x16xbf16>
    %cst_20 = arith.constant dense<0.000000e+00> : vector<8x16xf32>
    %39 = tpu.matmul %37, %38, %cst_20 {dimension_numbers = #tpu.dot_dimension_numbers<[1], [0], [0], [1], [0, 0, 1, 1], [], []>} : vector<8x128xbf16>, vector<128x16xbf16>, vector<8x16xf32> -> vector<8x16xf32>
    %c0_21 = arith.constant 0 : index
    %c0_22 = arith.constant 0 : index
    %40 = vector.load %arg9[%c0_21, %c0_22] : memref<1x16xf32, #tpu.memory_space<vmem>>, vector<1x16xf32>
    %41 = vector.broadcast %40 : vector<1x16xf32> to vector<8x16xf32>
    %42 = arith.addf %39, %41 : vector<8x16xf32>
    %43 = vector.extract_strided_slice %42 {offsets = [0, 0], sizes = [8, 8], strides = [1, 1]} : vector<8x16xf32> to vector<8x8xf32>
    %44 = vector.extract_strided_slice %42 {offsets = [0, 8], sizes = [8, 8], strides = [1, 1]} : vector<8x16xf32> to vector<8x8xf32>
    %c0_23 = arith.constant 0 : index
    %c0_24 = arith.constant 0 : index
    %45 = vector.load %arg3[%c0_23, %c0_24] : memref<8x8xf32, #tpu.memory_space<vmem>>, vector<8x8xf32>
    %cst_25 = arith.constant 5.000000e-01 : f32
    %46 = vector.broadcast %cst_25 : f32 to vector<8x8xf32>
    %47 = arith.mulf %46, %44 : vector<8x8xf32>
    %48 = math.exp %47 : vector<8x8xf32>
    %49 = arith.mulf %45, %48 : vector<8x8xf32>
    %50 = arith.addf %43, %49 : vector<8x8xf32>
    %51 = arith.truncf %50 : vector<8x8xf32> to vector<8x8xbf16>
    %c0_26 = arith.constant 0 : index
    %c0_27 = arith.constant 0 : index
    %52 = vector.load %arg10[%c0_26, %c0_27] : memref<8x128xbf16, #tpu.memory_space<vmem>>, vector<8x128xbf16>
    %cst_28 = arith.constant dense<0.000000e+00> : vector<8x128xf32>
    %53 = tpu.matmul %51, %52, %cst_28 {dimension_numbers = #tpu.dot_dimension_numbers<[1], [0], [0], [1], [0, 0, 1, 1], [], []>} : vector<8x8xbf16>, vector<8x128xbf16>, vector<8x128xf32> -> vector<8x128xf32>
    %c0_29 = arith.constant 0 : index
    %c0_30 = arith.constant 0 : index
    %54 = vector.load %arg2[%c0_29, %c0_30] : memref<8x4xf32, #tpu.memory_space<vmem>>, vector<8x4xf32>
    %55 = arith.truncf %54 : vector<8x4xf32> to vector<8x4xbf16>
    %c0_31 = arith.constant 0 : index
    %c0_32 = arith.constant 0 : index
    %56 = vector.load %arg11[%c0_31, %c0_32] : memref<4x128xbf16, #tpu.memory_space<vmem>>, vector<4x128xbf16>
    %cst_33 = arith.constant dense<0.000000e+00> : vector<8x128xf32>
    %57 = tpu.matmul %55, %56, %cst_33 {dimension_numbers = #tpu.dot_dimension_numbers<[1], [0], [0], [1], [0, 0, 1, 1], [], []>} : vector<8x4xbf16>, vector<4x128xbf16>, vector<8x128xf32> -> vector<8x128xf32>
    %58 = arith.addf %53, %57 : vector<8x128xf32>
    %c0_34 = arith.constant 0 : index
    %c0_35 = arith.constant 0 : index
    %59 = vector.load %arg12[%c0_34, %c0_35] : memref<1x128xf32, #tpu.memory_space<vmem>>, vector<1x128xf32>
    %60 = vector.broadcast %59 : vector<1x128xf32> to vector<8x128xf32>
    %61 = arith.addf %58, %60 : vector<8x128xf32>
    %cst_36 = arith.constant -3.000000e+01 : f32
    %62 = vector.broadcast %cst_36 : f32 to vector<8x128xf32>
    %63 = arith.maximumf %61, %62 : vector<8x128xf32>
    %cst_37 = arith.constant 0.000000e+00 : f32
    %64 = vector.broadcast %cst_37 : f32 to vector<8x128xf32>
    %65 = arith.subf %64, %63 : vector<8x128xf32>
    %66 = math.exp %65 : vector<8x128xf32>
    %cst_38 = arith.constant 1.000000e+00 : f32
    %67 = vector.broadcast %cst_38 : f32 to vector<8x128xf32>
    %68 = arith.addf %67, %66 : vector<8x128xf32>
    %69 = tpu.reciprocal %68 {approx = true} : vector<8x128xf32> -> vector<8x128xf32>
    %70 = arith.mulf %68, %69 : vector<8x128xf32>
    %cst_39 = arith.constant 2.000000e+00 : f32
    %71 = vector.broadcast %cst_39 : f32 to vector<8x128xf32>
    %72 = arith.subf %71, %70 : vector<8x128xf32>
    %73 = arith.mulf %69, %72 : vector<8x128xf32>
    %74 = arith.truncf %73 : vector<8x128xf32> to vector<8x128xbf16>
    %c0_40 = arith.constant 0 : index
    %c0_41 = arith.constant 0 : index
    %75 = vector.load %arg13[%c0_40, %c0_41] : memref<128x64xbf16, #tpu.memory_space<vmem>>, vector<128x64xbf16>
    %cst_42 = arith.constant dense<0.000000e+00> : vector<8x64xf32>
    %76 = tpu.matmul %74, %75, %cst_42 {dimension_numbers = #tpu.dot_dimension_numbers<[1], [0], [0], [1], [0, 0, 1, 1], [], []>} : vector<8x128xbf16>, vector<128x64xbf16>, vector<8x64xf32> -> vector<8x64xf32>
    %c0_43 = arith.constant 0 : index
    %c0_44 = arith.constant 0 : index
    %77 = vector.load %arg14[%c0_43, %c0_44] : memref<1x64xf32, #tpu.memory_space<vmem>>, vector<1x64xf32>
    %78 = vector.broadcast %77 : vector<1x64xf32> to vector<8x64xf32>
    %79 = arith.addf %76, %78 : vector<8x64xf32>
    %cst_45 = arith.constant -3.000000e+01 : f32
    %80 = vector.broadcast %cst_45 : f32 to vector<8x64xf32>
    %81 = arith.maximumf %79, %80 : vector<8x64xf32>
    %cst_46 = arith.constant 0.000000e+00 : f32
    %82 = vector.broadcast %cst_46 : f32 to vector<8x64xf32>
    %83 = arith.subf %82, %81 : vector<8x64xf32>
    %84 = math.exp %83 : vector<8x64xf32>
    %cst_47 = arith.constant 1.000000e+00 : f32
    %85 = vector.broadcast %cst_47 : f32 to vector<8x64xf32>
    %86 = arith.addf %85, %84 : vector<8x64xf32>
    %87 = tpu.reciprocal %86 {approx = true} : vector<8x64xf32> -> vector<8x64xf32>
    %88 = arith.mulf %86, %87 : vector<8x64xf32>
    %cst_48 = arith.constant 2.000000e+00 : f32
    %89 = vector.broadcast %cst_48 : f32 to vector<8x64xf32>
    %90 = arith.subf %89, %88 : vector<8x64xf32>
    %91 = arith.mulf %87, %90 : vector<8x64xf32>
    %92 = arith.truncf %91 : vector<8x64xf32> to vector<8x64xbf16>
    %c0_49 = arith.constant 0 : index
    %c0_50 = arith.constant 0 : index
    %93 = vector.load %arg15[%c0_49, %c0_50] : memref<64x16xbf16, #tpu.memory_space<vmem>>, vector<64x16xbf16>
    %cst_51 = arith.constant dense<0.000000e+00> : vector<8x16xf32>
    %94 = tpu.matmul %92, %93, %cst_51 {dimension_numbers = #tpu.dot_dimension_numbers<[1], [0], [0], [1], [0, 0, 1, 1], [], []>} : vector<8x64xbf16>, vector<64x16xbf16>, vector<8x16xf32> -> vector<8x16xf32>
    %c0_52 = arith.constant 0 : index
    %c0_53 = arith.constant 0 : index
    %95 = vector.load %arg16[%c0_52, %c0_53] : memref<1x16xf32, #tpu.memory_space<vmem>>, vector<1x16xf32>
    %96 = vector.broadcast %95 : vector<1x16xf32> to vector<8x16xf32>
    %97 = arith.addf %94, %96 : vector<8x16xf32>
    %98 = tpu.concatenate %97, %42 in 1 : vector<8x16xf32>, vector<8x16xf32> -> vector<8x32xf32>
    %c0_54 = arith.constant 0 : index
    %c0_55 = arith.constant 0 : index
    %99 = vector.load %arg17[%c0_54, %c0_55] : memref<8x32xf32, #tpu.memory_space<vmem>>, vector<8x32xf32>
    tpu.vector_store %arg17[%c0_54, %c0_55], %98 {strides = array<i32>} : memref<8x32xf32, #tpu.memory_space<vmem>>, vector<8x32xf32>,
    return
  }
  func.func @transform_0(%arg0: i32) -> (i32, i32) {
    %c0_i32 = arith.constant 0 : i32
    %c0_i32_0 = arith.constant 0 : i32
    return %arg0, %c0_i32 : i32, i32
  }
  func.func @transform_1(%arg0: i32) -> (i32, i32) {
    %c0_i32 = arith.constant 0 : i32
    %c0_i32_0 = arith.constant 0 : i32
    return %arg0, %c0_i32 : i32, i32
  }
  func.func @transform_2(%arg0: i32) -> (i32, i32) {
    %c0_i32 = arith.constant 0 : i32
    %c0_i32_0 = arith.constant 0 : i32
    return %arg0, %c0_i32 : i32, i32
  }
  func.func @transform_3(%arg0: i32) -> (i32, i32) {
    %c0_i32 = arith.constant 0 : i32
    %c0_i32_0 = arith.constant 0 : i32
    %c0_i32_1 = arith.constant 0 : i32
    return %c0_i32, %c0_i32_0 : i32, i32
  }
  func.func @transform_4(%arg0: i32) -> (i32, i32) {
    %c0_i32 = arith.constant 0 : i32
    %c0_i32_0 = arith.constant 0 : i32
    %c0_i32_1 = arith.constant 0 : i32
    return %c0_i32, %c0_i32_0 : i32, i32
  }
  func.func @transform_5(%arg0: i32) -> (i32, i32) {
    %c0_i32 = arith.constant 0 : i32
    %c0_i32_0 = arith.constant 0 : i32
    %c0_i32_1 = arith.constant 0 : i32
    return %c0_i32, %c0_i32_0 : i32, i32
  }
  func.func @transform_6(%arg0: i32) -> (i32, i32) {
    %c0_i32 = arith.constant 0 : i32
    %c0_i32_0 = arith.constant 0 : i32
    %c0_i32_1 = arith.constant 0 : i32
    return %c0_i32, %c0_i32_0 : i32, i32
  }
  func.func @transform_7(%arg0: i32) -> (i32, i32) {
    %c0_i32 = arith.constant 0 : i32
    %c0_i32_0 = arith.constant 0 : i32
    %c0_i32_1 = arith.constant 0 : i32
    return %c0_i32, %c0_i32_0 : i32, i32
  }
  func.func @transform_8(%arg0: i32) -> (i32, i32) {
    %c0_i32 = arith.constant 0 : i32
    %c0_i32_0 = arith.constant 0 : i32
    %c0_i32_1 = arith.constant 0 : i32
    return %c0_i32, %c0_i32_0 : i32, i32
  }
  func.func @transform_9(%arg0: i32) -> (i32, i32) {
    %c0_i32 = arith.constant 0 : i32
    %c0_i32_0 = arith.constant 0 : i32
    %c0_i32_1 = arith.constant 0 : i32
    return %c0_i32, %c0_i32_0 : i32, i32
  }
  func.func @transform_10(%arg0: i32) -> (i32, i32) {
    %c0_i32 = arith.constant 0 : i32
    %c0_i32_0 = arith.constant 0 : i32
    %c0_i32_1 = arith.constant 0 : i32
    return %c0_i32, %c0_i32_0 : i32, i32
  }
  func.func @transform_11(%arg0: i32) -> (i32, i32) {
    %c0_i32 = arith.constant 0 : i32
    %c0_i32_0 = arith.constant 0 : i32
    %c0_i32_1 = arith.constant 0 : i32
    return %c0_i32, %c0_i32_0 : i32, i32
  }
  func.func @transform_12(%arg0: i32) -> (i32, i32) {
    %c0_i32 = arith.constant 0 : i32
    %c0_i32_0 = arith.constant 0 : i32
    %c0_i32_1 = arith.constant 0 : i32
    return %c0_i32, %c0_i32_0 : i32, i32
  }
  func.func @transform_13(%arg0: i32) -> (i32, i32) {
    %c0_i32 = arith.constant 0 : i32
    %c0_i32_0 = arith.constant 0 : i32
    %c0_i32_1 = arith.constant 0 : i32
    return %c0_i32, %c0_i32_0 : i32, i32
  }
  func.func @transform_14(%arg0: i32) -> (i32, i32) {
    %c0_i32 = arith.constant 0 : i32
    %c0_i32_0 = arith.constant 0 : i32
    %c0_i32_1 = arith.constant 0 : i32
    return %c0_i32, %c0_i32_0 : i32, i32
  }
  func.func @transform_15(%arg0: i32) -> (i32, i32) {
    %c0_i32 = arith.constant 0 : i32
    %c0_i32_0 = arith.constant 0 : i32
    %c0_i32_1 = arith.constant 0 : i32
    return %c0_i32, %c0_i32_0 : i32, i32
  }
  func.func @transform_16(%arg0: i32) -> (i32, i32) {
    %c0_i32 = arith.constant 0 : i32
    %c0_i32_0 = arith.constant 0 : i32
    return %arg0, %c0_i32 : i32, i32
  }
}

</mosaic_0001>

<llo_original>
// kernel: cvae_forward.1
$region0: #{cvae_forward.1}
  #allocation0 [shape = 'u32[]', space=smem, size = 0x4, offset = 0x4, fixed_abs, tag = 'smem constant byte address 0x4 - core index']
  #allocation1 [shape = 'u32[72,128]{1,0:T(1,128)}', space=vmem, size = 0x9000, scoped, tag = 'internal scratch']
  %s0 = inlined_call_operand.vmem [shape: f32[8,16], index: 0, kind: input, shape index: {}]
  %s1 = inlined_call_operand.vmem [shape: f32[8,4], index: 1, kind: input, shape index: {}]
  %s2 = inlined_call_operand.vmem [shape: f32[8,8], index: 2, kind: input, shape index: {}]
  %s3 = inlined_call_operand.vmem [shape: bf16[16,64], index: 3, kind: input, shape index: {}]
  %s4 = inlined_call_operand.vmem [shape: f32[1,64], index: 4, kind: input, shape index: {}]
  %s5 = inlined_call_operand.vmem [shape: bf16[64,128], index: 5, kind: input, shape index: {}]
  %s6 = inlined_call_operand.vmem [shape: f32[1,128], index: 6, kind: input, shape index: {}]
  %s7 = inlined_call_operand.vmem [shape: bf16[128,16], index: 7, kind: input, shape index: {}]
  %s8 = inlined_call_operand.vmem [shape: f32[1,16], index: 8, kind: input, shape index: {}]
  %s9 = inlined_call_operand.vmem [shape: bf16[8,128], index: 9, kind: input, shape index: {}]
  %s10 = inlined_call_operand.vmem [shape: bf16[4,128], index: 10, kind: input, shape index: {}]
  %s11 = inlined_call_operand.vmem [shape: f32[1,128], index: 11, kind: input, shape index: {}]
  %s12 = inlined_call_operand.vmem [shape: bf16[128,64], index: 12, kind: input, shape index: {}]
  %s13 = inlined_call_operand.vmem [shape: f32[1,64], index: 13, kind: input, shape index: {}]
  %s14 = inlined_call_operand.vmem [shape: bf16[64,16], index: 14, kind: input, shape index: {}]
  %s15 = inlined_call_operand.vmem [shape: f32[1,16], index: 15, kind: input, shape index: {}]
  %s16 = inlined_call_operand.vmem [shape: f32[8,32], index: 16, kind: output, shape index: {}]
  %s17 = sld [smem:[#allocation0]]
  $region74: #{cvae_forward.1} parent=0
    _
  %s19 = ssub.s32 1, %s17
  %s20 = scalar_select 0, %s19, %s17
  // Predicated region
  $region2: #{cvae_forward.1} parent=0 // pred_check
    _
  $region3: #{cvae_forward.1} parent=0 // pred_check_branch
    %22 = sbr.rel (0) target = $region5
  $region4: #{cvae_forward.1} parent=0 // pred_region
    _
  $region5: #{cvae_forward.1} parent=0 // pred_fallthru
    _
  // Predicated region
  $region6: #{cvae_forward.1} parent=0 // pred_check
    _
  $region7: #{cvae_forward.1} parent=0 // pred_check_branch
    %24 = sbr.rel (0) target = $region9
  $region8: #{cvae_forward.1} parent=0 // pred_region
    _
  $region9: #{cvae_forward.1} parent=0 // pred_fallthru
    _
  // Predicated region
  $region10: #{cvae_forward.1} parent=0 // pred_check
    _
  $region11: #{cvae_forward.1} parent=0 // pred_check_branch
    %26 = sbr.rel (0) target = $region13
  $region12: #{cvae_forward.1} parent=0 // pred_region
    _
  $region13: #{cvae_forward.1} parent=0 // pred_fallthru
    _
  // Predicated region
  $region14: #{cvae_forward.1} parent=0 // pred_check
    _
  $region15: #{cvae_forward.1} parent=0 // pred_check_branch
    %28 = sbr.rel (0) target = $region17
  $region16: #{cvae_forward.1} parent=0 // pred_region
    _
  $region17: #{cvae_forward.1} parent=0 // pred_fallthru
    _
  // Predicated region
  $region18: #{cvae_forward.1} parent=0 // pred_check
    _
  $region19: #{cvae_forward.1} parent=0 // pred_check_branch
    %30 = sbr.rel (0) target = $region21
  $region20: #{cvae_forward.1} parent=0 // pred_region
    _
  $region21: #{cvae_forward.1} parent=0 // pred_fallthru
    _
  // Predicated region
  $region22: #{cvae_forward.1} parent=0 // pred_check
    _
  $region23: #{cvae_forward.1} parent=0 // pred_check_branch
    %32 = sbr.rel (0) target = $region25
  $region24: #{cvae_forward.1} parent=0 // pred_region
    _
  $region25: #{cvae_forward.1} parent=0 // pred_fallthru
    _
  // Predicated region
  $region26: #{cvae_forward.1} parent=0 // pred_check
    _
  $region27: #{cvae_forward.1} parent=0 // pred_check_branch
    %34 = sbr.rel (0) target = $region29
  $region28: #{cvae_forward.1} parent=0 // pred_region
    _
  $region29: #{cvae_forward.1} parent=0 // pred_fallthru
    _
  // Predicated region
  $region30: #{cvae_forward.1} parent=0 // pred_check
    _
  $region31: #{cvae_forward.1} parent=0 // pred_check_branch
    %36 = sbr.rel (0) target = $region33
  $region32: #{cvae_forward.1} parent=0 // pred_region
    _
  $region33: #{cvae_forward.1} parent=0 // pred_fallthru
    _
  // Predicated region
  $region34: #{cvae_forward.1} parent=0 // pred_check
    _
  $region35: #{cvae_forward.1} parent=0 // pred_check_branch
    %38 = sbr.rel (0) target = $region37
  $region36: #{cvae_forward.1} parent=0 // pred_region
    _
  $region37: #{cvae_forward.1} parent=0 // pred_fallthru
    _
  // Predicated region
  $region38: #{cvae_forward.1} parent=0 // pred_check
    _
  $region39: #{cvae_forward.1} parent=0 // pred_check_branch
    %40 = sbr.rel (0) target = $region41
  $region40: #{cvae_forward.1} parent=0 // pred_region
    _
  $region41: #{cvae_forward.1} parent=0 // pred_fallthru
    _
  // Predicated region
  $region42: #{cvae_forward.1} parent=0 // pred_check
    _
  $region43: #{cvae_forward.1} parent=0 // pred_check_branch
    %42 = sbr.rel (0) target = $region45
  $region44: #{cvae_forward.1} parent=0 // pred_region
    _
  $region45: #{cvae_forward.1} parent=0 // pred_fallthru
    _
  // Predicated region
  $region46: #{cvae_forward.1} parent=0 // pred_check
    _
  $region47: #{cvae_forward.1} parent=0 // pred_check_branch
    %44 = sbr.rel (0) target = $region49
  $region48: #{cvae_forward.1} parent=0 // pred_region
    _
  $region49: #{cvae_forward.1} parent=0 // pred_fallthru
    _
  // Predicated region
  $region50: #{cvae_forward.1} parent=0 // pred_check
    _
  $region51: #{cvae_forward.1} parent=0 // pred_check_branch
    %46 = sbr.rel (0) target = $region53
  $region52: #{cvae_forward.1} parent=0 // pred_region
    _
  $region53: #{cvae_forward.1} parent=0 // pred_fallthru
    _
  // Predicated region
  $region54: #{cvae_forward.1} parent=0 // pred_check
    _
  $region55: #{cvae_forward.1} parent=0 // pred_check_branch
    %48 = sbr.rel (0) target = $region57
  $region56: #{cvae_forward.1} parent=0 // pred_region
    _
  $region57: #{cvae_forward.1} parent=0 // pred_fallthru
    _
  // Predicated region
  $region58: #{cvae_forward.1} parent=0 // pred_check
    _
  $region59: #{cvae_forward.1} parent=0 // pred_check_branch
    %50 = sbr.rel (0) target = $region61
  $region60: #{cvae_forward.1} parent=0 // pred_region
    _
  $region61: #{cvae_forward.1} parent=0 // pred_fallthru
    _
  // Predicated region
  $region62: #{cvae_forward.1} parent=0 // pred_check
    _
  $region63: #{cvae_forward.1} parent=0 // pred_check_branch
    %52 = sbr.rel (0) target = $region65
  $region64: #{cvae_forward.1} parent=0 // pred_region
    _
  $region65: #{cvae_forward.1} parent=0 // pred_fallthru
    _
  %v54 = vld [vmem:[%s0] sm:$0xff]
  %v55 = vpack.c.bf16 %v54, %v54
  %v56 = vld [vmem:[%s3] sm:$0xf]
  %v57 = vld [vmem:[%s3 + $0x4] sm:$0xf]
  %v58 = vld [vmem:[%s4] sm:$0x1]
  %v60 = vperm.slane %v58, 0
  %v64 = vunpack.c.l.b16 %v56
  %v65 = vunpack.c.l.b16 %v57
  %v66 = vpack.c.b16 %v65, %v64
  %vm68 = vcmask 130048
  %v70 = vsel %vm68, %v55, 0
  %72 = vmatpush.bf16.msra.mxu0 0
  %73 = vmatpush.bf16.msra.mxu0 0
  %74 = vmatpush.bf16.msra.mxu0 0
  %75 = vmatpush.bf16.msra.mxu0 0
  %76 = vmatpush.bf16.msra.mxu0 0
  %77 = vmatpush.bf16.msra.mxu0 0
  %78 = vmatpush.bf16.msra.mxu0 0
  %79 = vmatpush.bf16.msra.mxu0 %v66
  %80 = vmatmul.bf16.gmra.mxu0 %v70
  %v81 = vpop.f32.mrf.mxu0
  %v82 = vadd.f32 %v60, %v81
  %v83 = vpop.f32.mrf.mxu0
  %84 = vdwg.mxu0
  %v85 = vmax.f32 %v82, -30.0
  %v86 = vsub.f32 0.0, %v85
  %v87 = vmul.f32 %v86, 1.442695
  %v88 = vpow.pop %v87
  %v89 = vadd.f32 %v88, 1.0
  %v90 = vrcp.pop %v89
  %v91 = vmul.f32 %v89, %v90
  %v92 = vsub.f32 2.0, %v91
  %v93 = vmul.f32 %v90, %v92
  %v94 = vpack.c.bf16 %v93, %v93
  %v95 = vld [vmem:[%s5] sm:$0xf]
  %v96 = vld [vmem:[%s5 + $0x4] sm:$0xf]
  %v97 = vld [vmem:[%s5 + $0x8] sm:$0xf]
  %v98 = vld [vmem:[%s5 + $0xc] sm:$0xf]
  %v99 = vld [vmem:[%s5 + $0x10] sm:$0xf]
  %v100 = vld [vmem:[%s5 + $0x14] sm:$0xf]
  %v101 = vld [vmem:[%s5 + $0x18] sm:$0xf]
  %v102 = vld [vmem:[%s5 + $0x1c] sm:$0xf]
  %v103 = vld [vmem:[%s6] sm:$0x1]
  %v105 = vperm.slane %v103, 0
  %v115 = vunpack.c.l.b16 %v95
  %v116 = vunpack.c.l.b16 %v96
  %v117 = vunpack.c.l.b16 %v97
  %v118 = vunpack.c.l.b16 %v98
  %v119 = vunpack.c.l.b16 %v99
  %v120 = vunpack.c.l.b16 %v100
  %v121 = vunpack.c.l.b16 %v101
  %v122 = vunpack.c.l.b16 %v102
  %v123 = vpack.c.b16 %v116, %v115
  %v124 = vpack.c.b16 %v118, %v117
  %v125 = vpack.c.b16 %v120, %v119
  %v126 = vpack.c.b16 %v122, %v121
  %vm131 = vcmask 523264
  %v133 = vsel %vm131, %v94, 0
  %135 = vmatpush.bf16.msra.mxu0 0
  %136 = vmatpush.bf16.msra.mxu0 0
  %137 = vmatpush.bf16.msra.mxu0 0
  %138 = vmatpush.bf16.msra.mxu0 0
  %139 = vmatpush.bf16.msra.mxu0 %v126
  %140 = vmatpush.bf16.msra.mxu0 %v125
  %141 = vmatpush.bf16.msra.mxu0 %v124
  %142 = vmatpush.bf16.msra.mxu0 %v123
  %143 = vmatmul.bf16.gmra.mxu0 %v133
  %v144 = vpop.f32.mrf.mxu0
  %v145 = vadd.f32 %v105, %v144
  %v146 = vpop.f32.mrf.mxu0
  %147 = vdwg.mxu0
  %v148 = vmax.f32 %v145, -30.0
  %v149 = vsub.f32 0.0, %v148
  %v150 = vmul.f32 %v149, 1.442695
  %v151 = vpow.pop %v150
  %v152 = vadd.f32 %v151, 1.0
  %v153 = vrcp.pop %v152
  %v154 = vmul.f32 %v152, %v153
  %v155 = vsub.f32 2.0, %v154
  %v156 = vmul.f32 %v153, %v155
  %v157 = vpack.c.bf16 %v156, %v156
  %v158 = vld [vmem:[%s7] sm:$0xf]
  %v159 = vld [vmem:[%s7 + $0x4] sm:$0xf]
  %v160 = vld [vmem:[%s7 + $0x8] sm:$0xf]
  %v161 = vld [vmem:[%s7 + $0xc] sm:$0xf]
  %v162 = vld [vmem:[%s7 + $0x10] sm:$0xf]
  %v163 = vld [vmem:[%s7 + $0x14] sm:$0xf]
  %v164 = vld [vmem:[%s7 + $0x18] sm:$0xf]
  %v165 = vld [vmem:[%s7 + $0x1c] sm:$0xf]
  %v166 = vld [vmem:[%s7 + $0x20] sm:$0xf]
  %v167 = vld [vmem:[%s7 + $0x24] sm:$0xf]
  %v168 = vld [vmem:[%s7 + $0x28] sm:$0xf]
  %v169 = vld [vmem:[%s7 + $0x2c] sm:$0xf]
  %v170 = vld [vmem:[%s7 + $0x30] sm:$0xf]
  %v171 = vld [vmem:[%s7 + $0x34] sm:$0xf]
  %v172 = vld [vmem:[%s7 + $0x38] sm:$0xf]
  %v173 = vld [vmem:[%s7 + $0x3c] sm:$0xf]
  %v174 = vld [vmem:[%s8] sm:$0x1]
  %v176 = vperm.slane %v174, 0
  %v194 = vunpack.c.l.b16 %v158
  %v195 = vunpack.c.l.b16 %v159
  %v196 = vunpack.c.l.b16 %v160
  %v197 = vunpack.c.l.b16 %v161
  %v198 = vunpack.c.l.b16 %v162
  %v199 = vunpack.c.l.b16 %v163
  %v200 = vunpack.c.l.b16 %v164
  %v201 = vunpack.c.l.b16 %v165
  %v202 = vunpack.c.l.b16 %v166
  %v203 = vunpack.c.l.b16 %v167
  %v204 = vunpack.c.l.b16 %v168
  %v205 = vunpack.c.l.b16 %v169
  %v206 = vunpack.c.l.b16 %v170
  %v207 = vunpack.c.l.b16 %v171
  %v208 = vunpack.c.l.b16 %v172
  %v209 = vunpack.c.l.b16 %v173
  %v210 = vpack.c.b16 %v195, %v194
  %v211 = vpack.c.b16 %v197, %v196
  %v212 = vpack.c.b16 %v199, %v198
  %v213 = vpack.c.b16 %v201, %v200
  %v214 = vpack.c.b16 %v203, %v202
  %v215 = vpack.c.b16 %v205, %v204
  %v216 = vpack.c.b16 %v207, %v206
  %v217 = vpack.c.b16 %v209, %v208
  %226 = vmatpush.bf16.msra.mxu0 %v217
  %227 = vmatpush.bf16.msra.mxu0 %v216
  %228 = vmatpush.bf16.msra.mxu0 %v215
  %229 = vmatpush.bf16.msra.mxu0 %v214
  %230 = vmatpush.bf16.msra.mxu0 %v213
  %231 = vmatpush.bf16.msra.mxu0 %v212
  %232 = vmatpush.bf16.msra.mxu0 %v211
  %233 = vmatpush.bf16.msra.mxu0 %v210
  %234 = vmatmul.bf16.gmra.mxu0 %v157
  %v235 = vpop.f32.mrf.mxu0
  %v236 = vadd.f32 %v176, %v235
  %v237 = vpop.f32.mrf.mxu0
  %238 = vdwg.mxu0
  %v239 = vld [vmem:[%s2] sm:$0xff]
  %v240 = vmul.f32 %v236, 0.5
  %v241 = vmul.f32 %v240, 1.442695
  %v242 = vpow.pop %v241
  %244 = vrot.lane.b32.xlu0 %v242, 120
  %v245 = vpop.permute.xlu0 %244
  %v247 = vmul.f32 %v239, %v245
  %v248 = vadd.f32 %v236, %v247
  %v249 = vpack.c.bf16 %v248, %v248
  %v250 = vld [vmem:[%s9] sm:$0xf]
  %v251 = vld [vmem:[%s1] sm:$0xff]
  %v252 = vpack.c.bf16 %v251, %v251
  %v253 = vld [vmem:[%s10] sm:$0x3]
  %vm254 = vcmask 31744
  %v256 = vsel %vm254, %v252, 0
  %vm258 = vcmask 1041408
  %v260 = vsel %vm258, %v253, 0
  %262 = vmatpush.bf16.msra.mxu0 0
  %263 = vmatpush.bf16.msra.mxu0 0
  %264 = vmatpush.bf16.msra.mxu0 0
  %265 = vmatpush.bf16.msra.mxu0 0
  %266 = vmatpush.bf16.msra.mxu0 0
  %267 = vmatpush.bf16.msra.mxu0 0
  %268 = vmatpush.bf16.msra.mxu0 0
  %269 = vmatpush.bf16.msra.mxu0 %v260
  %270 = vmatmul.bf16.gmra.mxu0 %v256
  %v271 = vpop.f32.mrf.mxu0
  %v272 = vadd.f32 0.0, %v271
  %v273 = vpop.f32.mrf.mxu0
  %274 = vdwg.mxu0
  %vm275 = vcmask 64512
  %v277 = vsel %vm275, %v249, 0
  %vm279 = vcmask 1043456
  %v281 = vsel %vm279, %v250, 0
  %283 = vmatpush.bf16.msra.mxu0 0
  %284 = vmatpush.bf16.msra.mxu0 0
  %285 = vmatpush.bf16.msra.mxu0 0
  %286 = vmatpush.bf16.msra.mxu0 0
  %287 = vmatpush.bf16.msra.mxu0 0
  %288 = vmatpush.bf16.msra.mxu0 0
  %289 = vmatpush.bf16.msra.mxu0 0
  %290 = vmatpush.bf16.msra.mxu0 %v281
  %291 = vmatmul.bf16.gmra.mxu0 %v277
  %v292 = vpop.f32.mrf.mxu0
  %v293 = vadd.f32 %v272, %v292
  %v294 = vpop.f32.mrf.mxu0
  %295 = vdwg.mxu0
  %v296 = vld [vmem:[%s11] sm:$0x1]
  %v298 = vperm.slane %v296, 0
  %v300 = vadd.f32 %v293, %v298
  %v301 = vmax.f32 %v300, -30.0
  %v302 = vsub.f32 0.0, %v301
  %v303 = vmul.f32 %v302, 1.442695
  %v304 = vpow.pop %v303
  %v305 = vadd.f32 %v304, 1.0
  %v306 = vrcp.pop %v305
  %v307 = vmul.f32 %v305, %v306
  %v308 = vsub.f32 2.0, %v307
  %v309 = vmul.f32 %v306, %v308
  %v310 = vpack.c.bf16 %v309, %v309
  %v311 = vld [vmem:[%s12] sm:$0xf]
  %v312 = vld [vmem:[%s12 + $0x4] sm:$0xf]
  %v313 = vld [vmem:[%s12 + $0x8] sm:$0xf]
  %v314 = vld [vmem:[%s12 + $0xc] sm:$0xf]
  %v315 = vld [vmem:[%s12 + $0x10] sm:$0xf]
  %v316 = vld [vmem:[%s12 + $0x14] sm:$0xf]
  %v317 = vld [vmem:[%s12 + $0x18] sm:$0xf]
  %v318 = vld [vmem:[%s12 + $0x1c] sm:$0xf]
  %v319 = vld [vmem:[%s12 + $0x20] sm:$0xf]
  %v320 = vld [vmem:[%s12 + $0x24] sm:$0xf]
  %v321 = vld [vmem:[%s12 + $0x28] sm:$0xf]
  %v322 = vld [vmem:[%s12 + $0x2c] sm:$0xf]
  %v323 = vld [vmem:[%s12 + $0x30] sm:$0xf]
  %v324 = vld [vmem:[%s12 + $0x34] sm:$0xf]
  %v325 = vld [vmem:[%s12 + $0x38] sm:$0xf]
  %v326 = vld [vmem:[%s12 + $0x3c] sm:$0xf]
  %v327 = vld [vmem:[%s13] sm:$0x1]
  %v329 = vperm.slane %v327, 0
  %v347 = vunpack.c.l.b16 %v311
  %v348 = vunpack.c.l.b16 %v312
  %v349 = vunpack.c.l.b16 %v313
  %v350 = vunpack.c.l.b16 %v314
  %v351 = vunpack.c.l.b16 %v315
  %v352 = vunpack.c.l.b16 %v316
  %v353 = vunpack.c.l.b16 %v317
  %v354 = vunpack.c.l.b16 %v318
  %v355 = vunpack.c.l.b16 %v319
  %v356 = vunpack.c.l.b16 %v320
  %v357 = vunpack.c.l.b16 %v321
  %v358 = vunpack.c.l.b16 %v322
  %v359 = vunpack.c.l.b16 %v323
  %v360 = vunpack.c.l.b16 %v324
  %v361 = vunpack.c.l.b16 %v325
  %v362 = vunpack.c.l.b16 %v326
  %v363 = vpack.c.b16 %v348, %v347
  %v364 = vpack.c.b16 %v350, %v349
  %v365 = vpack.c.b16 %v352, %v351
  %v366 = vpack.c.b16 %v354, %v353
  %v367 = vpack.c.b16 %v356, %v355
  %v368 = vpack.c.b16 %v358, %v357
  %v369 = vpack.c.b16 %v360, %v359
  %v370 = vpack.c.b16 %v362, %v361
  %379 = vmatpush.bf16.msra.mxu0 %v370
  %380 = vmatpush.bf16.msra.mxu0 %v369
  %381 = vmatpush.bf16.msra.mxu0 %v368
  %382 = vmatpush.bf16.msra.mxu0 %v367
  %383 = vmatpush.bf16.msra.mxu0 %v366
  %384 = vmatpush.bf16.msra.mxu0 %v365
  %385 = vmatpush.bf16.msra.mxu0 %v364
  %386 = vmatpush.bf16.msra.mxu0 %v363
  %387 = vmatmul.bf16.gmra.mxu0 %v310
  %v388 = vpop.f32.mrf.mxu0
  %v389 = vadd.f32 %v329, %v388
  %v390 = vpop.f32.mrf.mxu0
  %391 = vdwg.mxu0
  %v392 = vmax.f32 %v389, -30.0
  %v393 = vsub.f32 0.0, %v392
  %v394 = vmul.f32 %v393, 1.442695
  %v395 = vpow.pop %v394
  %v396 = vadd.f32 %v395, 1.0
  %v397 = vrcp.pop %v396
  %v398 = vmul.f32 %v396, %v397
  %v399 = vsub.f32 2.0, %v398
  %v400 = vmul.f32 %v397, %v399
  %v401 = vpack.c.bf16 %v400, %v400
  %v402 = vld [vmem:[%s14] sm:$0xf]
  %v403 = vld [vmem:[%s14 + $0x4] sm:$0xf]
  %v404 = vld [vmem:[%s14 + $0x8] sm:$0xf]
  %v405 = vld [vmem:[%s14 + $0xc] sm:$0xf]
  %v406 = vld [vmem:[%s14 + $0x10] sm:$0xf]
  %v407 = vld [vmem:[%s14 + $0x14] sm:$0xf]
  %v408 = vld [vmem:[%s14 + $0x18] sm:$0xf]
  %v409 = vld [vmem:[%s14 + $0x1c] sm:$0xf]
  %v410 = vld [vmem:[%s15] sm:$0x1]
  %v412 = vperm.slane %v410, 0
  %v422 = vunpack.c.l.b16 %v402
  %v423 = vunpack.c.l.b16 %v403
  %v424 = vunpack.c.l.b16 %v404
  %v425 = vunpack.c.l.b16 %v405
  %v426 = vunpack.c.l.b16 %v406
  %v427 = vunpack.c.l.b16 %v407
  %v428 = vunpack.c.l.b16 %v408
  %v429 = vunpack.c.l.b16 %v409
  %v430 = vpack.c.b16 %v423, %v422
  %v431 = vpack.c.b16 %v425, %v424
  %v432 = vpack.c.b16 %v427, %v426
  %v433 = vpack.c.b16 %v429, %v428
  %v439 = vsel %vm131, %v401, 0
  %441 = vmatpush.bf16.msra.mxu0 0
  %442 = vmatpush.bf16.msra.mxu0 0
  %443 = vmatpush.bf16.msra.mxu0 0
  %444 = vmatpush.bf16.msra.mxu0 0
  %445 = vmatpush.bf16.msra.mxu0 %v433
  %446 = vmatpush.bf16.msra.mxu0 %v432
  %447 = vmatpush.bf16.msra.mxu0 %v431
  %448 = vmatpush.bf16.msra.mxu0 %v430
  %449 = vmatmul.bf16.gmra.mxu0 %v439
  %v450 = vpop.f32.mrf.mxu0
  %v451 = vadd.f32 %v412, %v450
  %v452 = vpop.f32.mrf.mxu0
  %453 = vdwg.mxu0
  %455 = vrot.lane.b32.xlu0 %v236, 16
  %v456 = vpop.permute.xlu0 %455
  %v458 = vsel %vm68, %v451, %v456
  %vm459 = vcmask 261120
  %460 = vst.msk [vmem:[%s16] sm:$0xff] %vm459, %v458
  // Predicated region
  $region66: #{cvae_forward.1} parent=0 // pred_check
    _
  $region67: #{cvae_forward.1} parent=0 // pred_check_branch
    %462 = sbr.rel (0) target = $region69
  $region68: #{cvae_forward.1} parent=0 // pred_region
    _
  $region69: #{cvae_forward.1} parent=0 // pred_fallthru
    _
  // Predicated region
  $region70: #{cvae_forward.1} parent=0 // pred_check
    _
  $region71: #{cvae_forward.1} parent=0 // pred_check_branch
    %464 = sbr.rel (0) target = $region73
  $region72: #{cvae_forward.1} parent=0 // pred_region
    _
  $region73: #{cvae_forward.1} parent=0 // pred_fallthru
    _

</llo_original>
